<compile_context>
chip_gen: v5e
topology: v5e:2x2
jax: 0.10.0
libtpu: 0.0.40
codegen_flags: <defaults>
</compile_context>

<pallas_src>
import functools

import jax
import jax.numpy as jnp
import numpy as np
from jax import lax
from jax.experimental import pallas as pl
from jax.experimental.pallas import tpu as pltpu


OUT_LANES = 128  # lane-dense output slab width -> unmasked stores


def _round_up(x, m):
    return (x + m - 1) // m * m


# ---------------------------------------------------------------------------
# Kernel 1: triple_classification hot path
#   z = Linear(768,1)(ReLU(Linear(768,768)(x)))
#   BCEWithLogitsLoss(reduction='none') vs train (soft) labels and score labels
#   Output slab columns: 0 = logit, 1 = BCE(train), 2 = BCE(score)
# ---------------------------------------------------------------------------
def _mlp_bce_kernel(x_ref, w1_ref, b1_ref, w2_ref, b2_ref, lab_ref, out_ref):
    # x arrives already bf16 (cast at the pallas_call boundary) -> half-size DMA.
    x = x_ref[...]                                                     # [tb, D] bf16
    h = jnp.dot(x, w1_ref[...], preferred_element_type=jnp.float32)   # MXU bf16xbf16->f32
    h = jnp.maximum(h + b1_ref[...], 0.0)                             # ReLU (f32 VPU)
    # TODO(synk): if profiling at tb>=512 shows ld/st slot saturation from the
    # f32 [tb,768] intermediate, chunk the ReLU+mul+reduce over row blocks.

    # N=1 matmul replaced by VPU multiply + XLU lane reduce (w2 stored as a row).
    z = jnp.sum(h * w2_ref[...], axis=-1, keepdims=True) + b2_ref[0]   # [tb, 1]

    lab = lab_ref[...]                                                 # [tb, 2] f32
    y_train = lab[:, 0:1]
    y_score = lab[:, 1:2]

    def bce_with_logits(logit, y):
        # numerically stable: max(z,0) - z*y + log1p(exp(-|z|))
        return (jnp.maximum(logit, 0.0) - logit * y
                + jnp.log1p(jnp.exp(-jnp.abs(logit))))

    t = bce_with_logits(z, y_train)
    s = bce_with_logits(z, y_score)

    tb = z.shape[0]
    col = lax.broadcasted_iota(jnp.int32, (tb, OUT_LANES), 1)
    out_ref[...] = (jnp.where(col == 0, z, 0.0)
                    + jnp.where(col == 1, t, 0.0)
                    + jnp.where(col == 2, s, 0.0))


def mlp_bce(x, w1, b1, w2, b2, train_labels, score_labels, *, block_b=256):
    B, D = x.shape
    # bf16 at the boundary: halves the x HBM read (the dominant traffic since w1
    # is VMEM-resident) and removes the in-kernel f32->bf16 pack.
    x = x.astype(jnp.bfloat16)
    # Pack the two 1-lane label streams into one (B, 2) block.
    labels = jnp.stack([train_labels.astype(jnp.float32),
                        score_labels.astype(jnp.float32)], axis=-1)    # (B, 2)

    tb = min(block_b, _round_up(B, 16))        # multiple of 16 for bf16 sublane packing
    Bp = _round_up(B, tb)
    if Bp != B:
        pad = Bp - B
        x = jnp.pad(x, ((0, pad), (0, 0)))
        labels = jnp.pad(labels, ((0, pad), (0, 0)))
    nb = Bp // tb

    w1_bf16 = w1.astype(jnp.bfloat16)                 # half-size, native MXU rate
    b1_row = b1.reshape(1, D).astype(jnp.float32)
    w2_row = w2.reshape(1, D).astype(jnp.float32)     # (768,1) column -> lane-dense row
    b2_s = b2.reshape(1).astype(jnp.float32)          # scalar -> SMEM

    # Rough VMEM working set; only raise the scoped limit when the default
    # (16 MiB v5e / 32 MiB v6e,v7x) would be tight (block_b pushed past ~512).
    vmem_need = (D * D * 2                  # resident bf16 w1
                 + 2 * tb * D * 2           # double-buffered bf16 x tiles
                 + 2 * tb * OUT_LANES * 4   # double-buffered output slab
                 + 2 * tb * 2 * 4 + 4 * D * 4)
    cp_kwargs = {"dimension_semantics": ("parallel",)}   # batch grid -> 2nd TC on v7x
    if vmem_need > 12 * 1024 * 1024:
        cp_kwargs["vmem_limit_bytes"] = int(min(vmem_need + (8 << 20), 60 * 1024 * 1024))

    out = pl.pallas_call(
        _mlp_bce_kernel,
        out_shape=jax.ShapeDtypeStruct((Bp, OUT_LANES), jnp.float32),
        grid=(nb,),
        in_specs=[
            pl.BlockSpec((tb, D), lambda i: (i, 0)),               # x tile (bf16)
            pl.BlockSpec((D, D), lambda i: (0, 0)),                # w1 (VMEM-resident)
            pl.BlockSpec((1, D), lambda i: (0, 0)),                # b1
            pl.BlockSpec((1, D), lambda i: (0, 0)),                # w2 row
            pl.BlockSpec(memory_space=pltpu.MemorySpace.SMEM),     # b2 scalar
            pl.BlockSpec((tb, 2), lambda i: (i, 0)),               # packed labels
        ],
        out_specs=pl.BlockSpec((tb, OUT_LANES), lambda i: (i, 0)),
        compiler_params=pltpu.CompilerParams(**cp_kwargs),
    )(x, w1_bf16, b1_row, w2_row, b2_s, labels)

    out = out[:B]
    # logits (B,1), per-row BCE vs train labels (B,), per-row BCE vs score labels (B,)
    return out[:, 0:1], out[:, 1], out[:, 2]


# ---------------------------------------------------------------------------
# Kernel 2: link_prediction hot path.
#   Head and tail logits are processed in the SAME grid step (two in_specs, two
#   output slabs) -- no HBM concat round-trip.  The vocab axis V is tiled
#   ("flash softmax") with online max / sum-exp / label-logit / sum-logit
#   accumulators so realistic entity vocabularies never exceed VMEM.
#   Output slab columns: 0 = smoothed CE, 1 = plain CE (nll), 2 = softmax[label]
# ---------------------------------------------------------------------------
def _link_ce_kernel(h_log_ref, t_log_ref, lab_ref, h_out_ref, t_out_ref,
                    m_sc, l_sc, zl_sc, sz_sc, *, eps, v_total, block_v, needs_mask):
    kv = pl.program_id(1)
    nv = pl.num_programs(1)

    @pl.when(kv == 0)
    def _():
        m_sc[...] = jnp.full_like(m_sc, -1e30)     # running max
        l_sc[...] = jnp.zeros_like(l_sc)           # running sum(exp(logit - max))
        zl_sc[...] = jnp.zeros_like(zl_sc)         # logit at the label index
        sz_sc[...] = jnp.zeros_like(sz_sc)         # sum of logits (for smoothing term)

    labels = lab_ref[...]                          # [tr, 2] int32 (col 0 head, 1 tail)

    def update(s, log_ref):
        logits = log_ref[...].astype(jnp.float32)  # in-register upcast (bf16 input ok)
        tr, bv = logits.shape
        cols = kv * block_v + lax.broadcasted_iota(jnp.int32, (tr, bv), 1)
        if needs_mask:                             # V padded up to a block_v multiple
            valid = cols < v_total
            logits_m = jnp.where(valid, logits, -1e30)
            logits_s = jnp.where(valid, logits, 0.0)
        else:
            logits_m = logits
            logits_s = logits
        lab = labels[:, s:s + 1]                   # [tr, 1]

        m_prev = m_sc[s]
        m_new = jnp.maximum(m_prev, jnp.max(logits_m, axis=-1, keepdims=True))
        alpha = jnp.exp(m_prev - m_new)
        p = jnp.exp(logits_m - m_new)
        l_sc[s] = alpha * l_sc[s] + jnp.sum(p, axis=-1, keepdims=True)
        m_sc[s] = m_new

        onehot = (cols == lab).astype(jnp.float32)
        zl_sc[s] = zl_sc[s] + jnp.sum(onehot * logits_s, axis=-1, keepdims=True)
        sz_sc[s] = sz_sc[s] + jnp.sum(logits_s, axis=-1, keepdims=True)

    update(0, h_log_ref)
    update(1, t_log_ref)

    @pl.when(kv == nv - 1)
    def _():
        def finalize(s, out_ref):
            log_denom = m_sc[s] + jnp.log(l_sc[s])              # full log-sum-exp
            nll = log_denom - zl_sc[s]                          # plain CE at label
            smooth = log_denom - sz_sc[s] * (1.0 / float(v_total))   # mean_k(-logp_k)
            loss = (1.0 - eps) * nll + eps * smooth             # label-smoothed CE
            prob = jnp.exp(-nll)                                # softmax prob at label
            tr = nll.shape[0]
            col = lax.broadcasted_iota(jnp.int32, (tr, OUT_LANES), 1)
            out_ref[...] = (jnp.where(col == 0, loss, 0.0)
                            + jnp.where(col == 1, nll, 0.0)
                            + jnp.where(col == 2, prob, 0.0))
        finalize(0, h_out_ref)
        finalize(1, t_out_ref)


def link_ce_softmax(head_logits, tail_logits, head_labels, tail_labels,
                    label_smoothing, *, target_tile_bytes=2 << 20,
                    max_block_rows=1024, max_block_v=2048):
    R, V = head_logits.shape
    assert tail_logits.shape == (R, V)
    # Pack head/tail labels into one tiny (R, 2) int32 stream.
    labels2 = jnp.stack([head_labels.astype(jnp.int32),
                         tail_labels.astype(jnp.int32)], axis=-1)

    # Row-tile size scales with V so each logits tile is ~target_tile_bytes.
    itemsize = jnp.dtype(head_logits.dtype).itemsize
    tr = int(target_tile_bytes // max(1, V * itemsize))
    tr = int(max(8, min(max_block_rows, tr)))
    tr = (tr // 8) * 8
    tr = min(tr, _round_up(R, 8))

    # V tiling (flash softmax): keep each logits block <= max_block_v lanes.
    if V <= max_block_v:
        bv, Vp = V, V
    else:
        bv = max_block_v                       # multiple of 128
        Vp = _round_up(V, bv)

    Rp = _round_up(R, tr)
    if Vp != V:
        head_logits = jnp.pad(head_logits, ((0, 0), (0, Vp - V)))
        tail_logits = jnp.pad(tail_logits, ((0, 0), (0, Vp - V)))
    if Rp != R:
        pad = Rp - R
        head_logits = jnp.pad(head_logits, ((0, pad), (0, 0)))
        tail_logits = jnp.pad(tail_logits, ((0, pad), (0, 0)))
        labels2 = jnp.pad(labels2, ((0, pad), (0, 0)))
    nr, nv = Rp // tr, Vp // bv

    kernel = functools.partial(_link_ce_kernel, eps=float(label_smoothing),
                               v_total=V, block_v=bv, needs_mask=(Vp != V))
    out_h, out_t = pl.pallas_call(
        kernel,
        out_shape=(jax.ShapeDtypeStruct((Rp, OUT_LANES), jnp.float32),
                   jax.ShapeDtypeStruct((Rp, OUT_LANES), jnp.float32)),
        grid=(nr, nv),
        in_specs=[pl.BlockSpec((tr, bv), lambda i, kv: (i, kv)),   # head logits tile
                  pl.BlockSpec((tr, bv), lambda i, kv: (i, kv)),   # tail logits tile
                  pl.BlockSpec((tr, 2), lambda i, kv: (i, 0))],    # packed labels
        out_specs=(pl.BlockSpec((tr, OUT_LANES), lambda i, kv: (i, 0)),
                   pl.BlockSpec((tr, OUT_LANES), lambda i, kv: (i, 0))),
        scratch_shapes=[pltpu.VMEM((2, tr, 1), jnp.float32)] * 4,
        compiler_params=pltpu.CompilerParams(
            dimension_semantics=("parallel", "arbitrary")),
    )(head_logits, tail_logits, labels2)

    out_h, out_t = out_h[:R], out_t[:R]
    return ((out_h[:, 0], out_h[:, 1], out_h[:, 2]),
            (out_t[:, 0], out_t[:, 1], out_t[:, 2]))


# ---------------------------------------------------------------------------
# NFormer forward (JAX glue around the Pallas kernels).  No host syncs here —
# arrays are returned; (code, value) info lists are built by the caller once.
# ---------------------------------------------------------------------------
# TODO(synk): the Knowformer `bert_encoder` is an external module that is not
# defined in nformer.py; its outputs (entity logits and pooled representations)
# are therefore taken as inputs to these forward functions.  If the encoder
# can emit bf16 logits they are consumed directly (in-kernel f32 upcast).
@functools.partial(jax.jit, static_argnames=("entity_begin_idx", "label_smoothing"))
def nformer_link_prediction(head_logits, tail_logits,
                            head_labels, tail_labels,
                            confidence, head_repre, tail_repre,
                            *, entity_begin_idx, label_smoothing):
    h_lab = head_labels.astype(jnp.int32) + entity_begin_idx
    t_lab = tail_labels.astype(jnp.int32) + entity_begin_idx
    (h_loss, h_nll, h_prob), (t_loss, t_nll, t_prob) = link_ce_softmax(
        head_logits, tail_logits, h_lab, t_lab, label_smoothing)

    train_loss = (confidence * (h_loss + t_loss)).mean()
    score = h_nll + t_nll                     # un-smoothed CE sum    -> loss_info
    logits_score = h_prob + t_prob            # softmax prob at label -> logits_score
    repre = [head_repre, tail_repre]
    return train_loss, score, repre, logits_score


@jax.jit
def nformer_triple_classification(origin_logits, train_labels, score_labels, mlp_params):
    w1, b1, w2, b2 = mlp_params
    logits, train_bce, score_bce = mlp_bce(
        origin_logits, w1, b1, w2, b2, train_labels, score_labels)
    batch_loss = train_bce.mean()
    return batch_loss, score_bce, origin_logits, logits


def build_info(code, values):
    # One blocking device->host transfer, performed by the caller after
    # block_until_ready — not inside the per-step forward path.
    vals = jax.device_get(values)
    return [(c, float(v)) for c, v in zip(code, vals)]


# ---------------------------------------------------------------------------
# Pure-JAX references (for tolerance checks only)
# ---------------------------------------------------------------------------
def _ce_reference(logits, labels, eps):
    logits = logits.astype(jnp.float32)
    logp = jax.nn.log_softmax(logits, axis=-1)
    nll = -jnp.take_along_axis(logp, labels[:, None], axis=-1)[:, 0]
    smooth = -logp.mean(axis=-1)
    loss = (1.0 - eps) * nll + eps * smooth
    prob = jnp.exp(-nll)
    return loss, nll, prob


def _mlp_bce_reference(x, w1, b1, w2, b2, y_train, y_score):
    h = jnp.dot(x.astype(jnp.bfloat16), w1.astype(jnp.bfloat16),
                preferred_element_type=jnp.float32) + b1.reshape(1, -1).astype(jnp.float32)
    h = jnp.maximum(h, 0.0)
    z = h @ w2.astype(jnp.float32).reshape(-1, 1) + b2.reshape(1, 1).astype(jnp.float32)

    def bce(logit, y):
        return (jnp.maximum(logit, 0.0) - logit * y
                + jnp.log1p(jnp.exp(-jnp.abs(logit))))
    return z, bce(z, y_train.reshape(-1, 1))[:, 0], bce(z, y_score.reshape(-1, 1))[:, 0]


# ---------------------------------------------------------------------------
if __name__ == "__main__":
    key = jax.random.PRNGKey(0)
    keys = jax.random.split(key, 12)

    B, D, V = 8, 768, 128            # batch, hidden (Linear(768,...)), struc vocab
    ENTITY_BEGIN_IDX = 3
    NUM_ENTITIES = V - ENTITY_BEGIN_IDX
    LABEL_SMOOTHING = 0.8            # args['low_degree'] == True

    # NFormer parameters: mlp = Linear(768,768) -> ReLU -> Linear(768,1)
    w1 = jax.random.normal(keys[0], (D, D), jnp.float32) * 0.02
    b1 = jnp.zeros((1, D), jnp.float32)
    w2 = jax.random.normal(keys[1], (D, 1), jnp.float32) * 0.02
    b2 = jnp.zeros((1, 1), jnp.float32)

    # Synthetic Knowformer encoder outputs (see TODO(synk) above).
    head_logits = jax.random.normal(keys[2], (B, V), jnp.float32)
    tail_logits = jax.random.normal(keys[3], (B, V), jnp.float32)
    head_repre = jax.random.normal(keys[4], (B, D), jnp.float32)
    tail_repre = jax.random.normal(keys[5], (B, D), jnp.float32)
    head_labels = jax.random.randint(keys[6], (B,), 0, NUM_ENTITIES, jnp.int32)
    tail_labels = jax.random.randint(keys[7], (B,), 0, NUM_ENTITIES, jnp.int32)
    confidence = jax.random.uniform(keys[8], (B,), jnp.float32)
    code = list(range(B))

    # forward() with use_kgc=True, return_all_layer=False
    loss, score, repre, logits_score = nformer_link_prediction(
        head_logits, tail_logits, head_labels, tail_labels,
        confidence, head_repre, tail_repre,
        entity_begin_idx=ENTITY_BEGIN_IDX, label_smoothing=LABEL_SMOOTHING)
    jax.block_until_ready((loss, score, logits_score))
    loss_info = build_info(code, score)
    logits_score_info = build_info(code, logits_score)

    # Reference check (f32 throughout on the CE path).
    rh_loss, rh_nll, rh_prob = _ce_reference(head_logits, head_labels + ENTITY_BEGIN_IDX,
                                             LABEL_SMOOTHING)
    rt_loss, rt_nll, rt_prob = _ce_reference(tail_logits, tail_labels + ENTITY_BEGIN_IDX,
                                             LABEL_SMOOTHING)
    ref_loss = (confidence * (rh_loss + rt_loss)).mean()
    np.testing.assert_allclose(np.asarray(loss), np.asarray(ref_loss), rtol=1e-4, atol=1e-4)
    np.testing.assert_allclose(np.asarray(score), np.asarray(rh_nll + rt_nll),
                               rtol=1e-4, atol=1e-4)
    np.testing.assert_allclose(np.asarray(logits_score), np.asarray(rh_prob + rt_prob),
                               rtol=1e-4, atol=1e-4)

    # triple_classification path (exercises the fused MLP + BCE kernel)
    origin_logits = jax.random.normal(keys[9], (B, D), jnp.float32)
    train_labels = jax.random.uniform(keys[10], (B,), jnp.float32)          # soft labels
    score_labels = (jax.random.uniform(keys[11], (B,), jnp.float32) > 0.5
                    ).astype(jnp.float32)
    tc_loss, tc_score, tc_origin_logits, tc_mlp_logits = nformer_triple_classification(
        origin_logits, train_labels, score_labels, (w1, b1, w2, b2))
    jax.block_until_ready((tc_loss, tc_score))
    tc_loss_info = build_info(code, tc_score)

    # Reference check (bf16 MXU operands in both kernel and reference).
    rz, rt_bce, rs_bce = _mlp_bce_reference(origin_logits, w1, b1, w2, b2,
                                            train_labels, score_labels)
    np.testing.assert_allclose(np.asarray(tc_mlp_logits), np.asarray(rz),
                               rtol=1e-2, atol=5e-3)
    np.testing.assert_allclose(np.asarray(tc_loss), np.asarray(rt_bce.mean()),
                               rtol=1e-2, atol=5e-3)
    np.testing.assert_allclose(np.asarray(tc_score), np.asarray(rs_bce),
                               rtol=1e-2, atol=5e-3)

    assert loss.shape == () and tc_loss.shape == ()
    assert len(loss_info) == B and len(logits_score_info) == B and len(tc_loss_info) == B
    assert tc_mlp_logits.shape == (B, 1) and tc_origin_logits.shape == (B, D)
    assert repre[0].shape == (B, D) and repre[1].shape == (B, D)
    print("KERNEL_OK")
</pallas_src>

<mosaic_0001>
module attributes {stable_mosaic.version = 11 : i64} {
  func.func @_link_ce_kernel(%arg0: i32, %arg1: i32, %arg2: memref<8x128xf32, #tpu.memory_space<vmem>>, %arg3: memref<8x128xf32, #tpu.memory_space<vmem>>, %arg4: memref<8x2xi32, #tpu.memory_space<vmem>>, %arg5: memref<8x128xf32, #tpu.memory_space<vmem>>, %arg6: memref<8x128xf32, #tpu.memory_space<vmem>>, %arg7: memref<2x8x1xf32, #tpu.memory_space<vmem>>, %arg8: memref<2x8x1xf32, #tpu.memory_space<vmem>>, %arg9: memref<2x8x1xf32, #tpu.memory_space<vmem>>, %arg10: memref<2x8x1xf32, #tpu.memory_space<vmem>>) attributes {dimension_semantics = [#tpu.dimension_semantics<parallel>, #tpu.dimension_semantics<arbitrary>], iteration_bounds = array<i64: 1, 1>, scalar_prefetch = 0 : i64, scratch_operands = 4 : i64, tpu.core_type = #tpu.core_type<tc>, window_params = [{transform_indices = @transform_0, window_bounds = array<i64: 8, 128>}, {transform_indices = @transform_1, window_bounds = array<i64: 8, 128>}, {transform_indices = @transform_2, window_bounds = array<i64: 8, 2>}, {transform_indices = @transform_3, window_bounds = array<i64: 8, 128>}, {transform_indices = @transform_4, window_bounds = array<i64: 8, 128>}]} {
    %c0_i32 = arith.constant 0 : i32
    %0 = arith.cmpi eq, %arg1, %c0_i32 : i32
    %1 = arith.extui %0 : i1 to i32
    %c0_i32_0 = arith.constant 0 : i32
    %2 = arith.cmpi ne, %1, %c0_i32_0 : i32
    scf.if %2 {
      %cst_63 = arith.constant -1.000000e+30 : f32
      %105 = vector.broadcast %cst_63 : f32 to vector<2x8x1xf32>
      %c0_64 = arith.constant 0 : index
      %c0_65 = arith.constant 0 : index
      %c0_66 = arith.constant 0 : index
      %106 = vector.load %arg7[%c0_64, %c0_65, %c0_66] : memref<2x8x1xf32, #tpu.memory_space<vmem>>, vector<2x8x1xf32>
      tpu.vector_store %arg7[%c0_64, %c0_65, %c0_66], %105 {strides = array<i32>} : memref<2x8x1xf32, #tpu.memory_space<vmem>>, vector<2x8x1xf32>,
      %cst_67 = arith.constant 0.000000e+00 : f32
      %107 = vector.broadcast %cst_67 : f32 to vector<2x8x1xf32>
      %c0_68 = arith.constant 0 : index
      %c0_69 = arith.constant 0 : index
      %c0_70 = arith.constant 0 : index
      %108 = vector.load %arg8[%c0_68, %c0_69, %c0_70] : memref<2x8x1xf32, #tpu.memory_space<vmem>>, vector<2x8x1xf32>
      tpu.vector_store %arg8[%c0_68, %c0_69, %c0_70], %107 {strides = array<i32>} : memref<2x8x1xf32, #tpu.memory_space<vmem>>, vector<2x8x1xf32>,
      %cst_71 = arith.constant 0.000000e+00 : f32
      %109 = vector.broadcast %cst_71 : f32 to vector<2x8x1xf32>
      %c0_72 = arith.constant 0 : index
      %c0_73 = arith.constant 0 : index
      %c0_74 = arith.constant 0 : index
      %110 = vector.load %arg9[%c0_72, %c0_73, %c0_74] : memref<2x8x1xf32, #tpu.memory_space<vmem>>, vector<2x8x1xf32>
      tpu.vector_store %arg9[%c0_72, %c0_73, %c0_74], %109 {strides = array<i32>} : memref<2x8x1xf32, #tpu.memory_space<vmem>>, vector<2x8x1xf32>,
      %cst_75 = arith.constant 0.000000e+00 : f32
      %111 = vector.broadcast %cst_75 : f32 to vector<2x8x1xf32>
      %c0_76 = arith.constant 0 : index
      %c0_77 = arith.constant 0 : index
      %c0_78 = arith.constant 0 : index
      %112 = vector.load %arg10[%c0_76, %c0_77, %c0_78] : memref<2x8x1xf32, #tpu.memory_space<vmem>>, vector<2x8x1xf32>
      tpu.vector_store %arg10[%c0_76, %c0_77, %c0_78], %111 {strides = array<i32>} : memref<2x8x1xf32, #tpu.memory_space<vmem>>, vector<2x8x1xf32>,
    } else {
    }
    %c0 = arith.constant 0 : index
    %c0_1 = arith.constant 0 : index
    %3 = vector.load %arg4[%c0, %c0_1] : memref<8x2xi32, #tpu.memory_space<vmem>>, vector<8x2xi32>
    %c0_2 = arith.constant 0 : index
    %c0_3 = arith.constant 0 : index
    %4 = vector.load %arg2[%c0_2, %c0_3] : memref<8x128xf32, #tpu.memory_space<vmem>>, vector<8x128xf32>
    %c128_i32 = arith.constant 128 : i32
    %5 = arith.muli %arg1, %c128_i32 : i32
    %6 = tpu.iota {dimensions = array<i32: 1>} : vector<8x128xi32>
    %7 = vector.broadcast %5 : i32 to vector<8x128xi32>
    %8 = arith.addi %7, %6 : vector<8x128xi32>
    %9 = vector.extract_strided_slice %3 {offsets = [0, 0], sizes = [8, 1], strides = [1, 1]} : vector<8x2xi32> to vector<8x1xi32>
    %c0_4 = arith.constant 0 : index
    %c0_5 = arith.constant 0 : index
    %c0_6 = arith.constant 0 : index
    %10 = vector.load %arg7[%c0_4, %c0_5, %c0_6] : memref<2x8x1xf32, #tpu.memory_space<vmem>>, vector<1x8x1xf32>
    %11 = vector.shape_cast %10 : vector<1x8x1xf32> to vector<8x1xf32>
    %cst = arith.constant dense<0xFF800000> : vector<8xf32>
    %12 = vector.multi_reduction <maximumf>, %4, %cst [1] : vector<8x128xf32> to vector<8xf32>
    %13 = vector.shape_cast %12 : vector<8xf32> to vector<8x1xf32>
    %14 = arith.maximumf %11, %13 : vector<8x1xf32>
    %15 = arith.subf %11, %14 : vector<8x1xf32>
    %16 = math.exp %15 : vector<8x1xf32>
    %17 = vector.broadcast %14 : vector<8x1xf32> to vector<8x128xf32>
    %18 = arith.subf %4, %17 : vector<8x128xf32>
    %19 = math.exp %18 : vector<8x128xf32>
    %c0_7 = arith.constant 0 : index
    %c0_8 = arith.constant 0 : index
    %c0_9 = arith.constant 0 : index
    %20 = vector.load %arg8[%c0_7, %c0_8, %c0_9] : memref<2x8x1xf32, #tpu.memory_space<vmem>>, vector<1x8x1xf32>
    %21 = vector.shape_cast %20 : vector<1x8x1xf32> to vector<8x1xf32>
    %22 = arith.mulf %16, %21 : vector<8x1xf32>
    %cst_10 = arith.constant dense<0.000000e+00> : vector<8xf32>
    %23 = vector.multi_reduction <add>, %19, %cst_10 [1] : vector<8x128xf32> to vector<8xf32>
    %24 = vector.shape_cast %23 : vector<8xf32> to vector<8x1xf32>
    %25 = arith.addf %22, %24 : vector<8x1xf32>
    %c0_11 = arith.constant 0 : index
    %c0_12 = arith.constant 0 : index
    %c0_13 = arith.constant 0 : index
    %26 = vector.load %arg8[%c0_11, %c0_12, %c0_13] : memref<2x8x1xf32, #tpu.memory_space<vmem>>, vector<1x8x1xf32>
    %27 = vector.shape_cast %26 : vector<1x8x1xf32> to vector<8x1xf32>
    %28 = vector.shape_cast %25 : vector<8x1xf32> to vector<1x8x1xf32>
    tpu.vector_store %arg8[%c0_11, %c0_12, %c0_13], %28 {strides = array<i32>} : memref<2x8x1xf32, #tpu.memory_space<vmem>>, vector<1x8x1xf32>,
    %c0_14 = arith.constant 0 : index
    %c0_15 = arith.constant 0 : index
    %c0_16 = arith.constant 0 : index
    %29 = vector.load %arg7[%c0_14, %c0_15, %c0_16] : memref<2x8x1xf32, #tpu.memory_space<vmem>>, vector<1x8x1xf32>
    %30 = vector.shape_cast %29 : vector<1x8x1xf32> to vector<8x1xf32>
    %31 = vector.shape_cast %14 : vector<8x1xf32> to vector<1x8x1xf32>
    tpu.vector_store %arg7[%c0_14, %c0_15, %c0_16], %31 {strides = array<i32>} : memref<2x8x1xf32, #tpu.memory_space<vmem>>, vector<1x8x1xf32>,
    %32 = vector.broadcast %9 : vector<8x1xi32> to vector<8x128xi32>
    %33 = arith.cmpi eq, %8, %32 : vector<8x128xi32>
    %34 = arith.extui %33 : vector<8x128xi1> to vector<8x128xi32>
    %35 = arith.sitofp %34 : vector<8x128xi32> to vector<8x128xf32>
    %c0_17 = arith.constant 0 : index
    %c0_18 = arith.constant 0 : index
    %c0_19 = arith.constant 0 : index
    %36 = vector.load %arg9[%c0_17, %c0_18, %c0_19] : memref<2x8x1xf32, #tpu.memory_space<vmem>>, vector<1x8x1xf32>
    %37 = vector.shape_cast %36 : vector<1x8x1xf32> to vector<8x1xf32>
    %38 = arith.mulf %35, %4 : vector<8x128xf32>
    %cst_20 = arith.constant dense<0.000000e+00> : vector<8xf32>
    %39 = vector.multi_reduction <add>, %38, %cst_20 [1] : vector<8x128xf32> to vector<8xf32>
    %40 = vector.shape_cast %39 : vector<8xf32> to vector<8x1xf32>
    %41 = arith.addf %37, %40 : vector<8x1xf32>
    %c0_21 = arith.constant 0 : index
    %c0_22 = arith.constant 0 : index
    %c0_23 = arith.constant 0 : index
    %42 = vector.load %arg9[%c0_21, %c0_22, %c0_23] : memref<2x8x1xf32, #tpu.memory_space<vmem>>, vector<1x8x1xf32>
    %43 = vector.shape_cast %42 : vector<1x8x1xf32> to vector<8x1xf32>
    %44 = vector.shape_cast %41 : vector<8x1xf32> to vector<1x8x1xf32>
    tpu.vector_store %arg9[%c0_21, %c0_22, %c0_23], %44 {strides = array<i32>} : memref<2x8x1xf32, #tpu.memory_space<vmem>>, vector<1x8x1xf32>,
    %c0_24 = arith.constant 0 : index
    %c0_25 = arith.constant 0 : index
    %c0_26 = arith.constant 0 : index
    %45 = vector.load %arg10[%c0_24, %c0_25, %c0_26] : memref<2x8x1xf32, #tpu.memory_space<vmem>>, vector<1x8x1xf32>
    %46 = vector.shape_cast %45 : vector<1x8x1xf32> to vector<8x1xf32>
    %cst_27 = arith.constant dense<0.000000e+00> : vector<8xf32>
    %47 = vector.multi_reduction <add>, %4, %cst_27 [1] : vector<8x128xf32> to vector<8xf32>
    %48 = vector.shape_cast %47 : vector<8xf32> to vector<8x1xf32>
    %49 = arith.addf %46, %48 : vector<8x1xf32>
    %c0_28 = arith.constant 0 : index
    %c0_29 = arith.constant 0 : index
    %c0_30 = arith.constant 0 : index
    %50 = vector.load %arg10[%c0_28, %c0_29, %c0_30] : memref<2x8x1xf32, #tpu.memory_space<vmem>>, vector<1x8x1xf32>
    %51 = vector.shape_cast %50 : vector<1x8x1xf32> to vector<8x1xf32>
    %52 = vector.shape_cast %49 : vector<8x1xf32> to vector<1x8x1xf32>
    tpu.vector_store %arg10[%c0_28, %c0_29, %c0_30], %52 {strides = array<i32>} : memref<2x8x1xf32, #tpu.memory_space<vmem>>, vector<1x8x1xf32>,
    %c0_31 = arith.constant 0 : index
    %c0_32 = arith.constant 0 : index
    %53 = vector.load %arg3[%c0_31, %c0_32] : memref<8x128xf32, #tpu.memory_space<vmem>>, vector<8x128xf32>
    %c128_i32_33 = arith.constant 128 : i32
    %54 = arith.muli %arg1, %c128_i32_33 : i32
    %55 = tpu.iota {dimensions = array<i32: 1>} : vector<8x128xi32>
    %56 = vector.broadcast %54 : i32 to vector<8x128xi32>
    %57 = arith.addi %56, %55 : vector<8x128xi32>
    %58 = vector.extract_strided_slice %3 {offsets = [0, 1], sizes = [8, 1], strides = [1, 1]} : vector<8x2xi32> to vector<8x1xi32>
    %c1 = arith.constant 1 : index
    %c0_34 = arith.constant 0 : index
    %c0_35 = arith.constant 0 : index
    %59 = vector.load %arg7[%c1, %c0_34, %c0_35] : memref<2x8x1xf32, #tpu.memory_space<vmem>>, vector<1x8x1xf32>
    %60 = vector.shape_cast %59 : vector<1x8x1xf32> to vector<8x1xf32>
    %cst_36 = arith.constant dense<0xFF800000> : vector<8xf32>
    %61 = vector.multi_reduction <maximumf>, %53, %cst_36 [1] : vector<8x128xf32> to vector<8xf32>
    %62 = vector.shape_cast %61 : vector<8xf32> to vector<8x1xf32>
    %63 = arith.maximumf %60, %62 : vector<8x1xf32>
    %64 = arith.subf %60, %63 : vector<8x1xf32>
    %65 = math.exp %64 : vector<8x1xf32>
    %66 = vector.broadcast %63 : vector<8x1xf32> to vector<8x128xf32>
    %67 = arith.subf %53, %66 : vector<8x128xf32>
    %68 = math.exp %67 : vector<8x128xf32>
    %c1_37 = arith.constant 1 : index
    %c0_38 = arith.constant 0 : index
    %c0_39 = arith.constant 0 : index
    %69 = vector.load %arg8[%c1_37, %c0_38, %c0_39] : memref<2x8x1xf32, #tpu.memory_space<vmem>>, vector<1x8x1xf32>
    %70 = vector.shape_cast %69 : vector<1x8x1xf32> to vector<8x1xf32>
    %71 = arith.mulf %65, %70 : vector<8x1xf32>
    %cst_40 = arith.constant dense<0.000000e+00> : vector<8xf32>
    %72 = vector.multi_reduction <add>, %68, %cst_40 [1] : vector<8x128xf32> to vector<8xf32>
    %73 = vector.shape_cast %72 : vector<8xf32> to vector<8x1xf32>
    %74 = arith.addf %71, %73 : vector<8x1xf32>
    %c1_41 = arith.constant 1 : index
    %c0_42 = arith.constant 0 : index
    %c0_43 = arith.constant 0 : index
    %75 = vector.load %arg8[%c1_41, %c0_42, %c0_43] : memref<2x8x1xf32, #tpu.memory_space<vmem>>, vector<1x8x1xf32>
    %76 = vector.shape_cast %75 : vector<1x8x1xf32> to vector<8x1xf32>
    %77 = vector.shape_cast %74 : vector<8x1xf32> to vector<1x8x1xf32>
    tpu.vector_store %arg8[%c1_41, %c0_42, %c0_43], %77 {strides = array<i32>} : memref<2x8x1xf32, #tpu.memory_space<vmem>>, vector<1x8x1xf32>,
    %c1_44 = arith.constant 1 : index
    %c0_45 = arith.constant 0 : index
    %c0_46 = arith.constant 0 : index
    %78 = vector.load %arg7[%c1_44, %c0_45, %c0_46] : memref<2x8x1xf32, #tpu.memory_space<vmem>>, vector<1x8x1xf32>
    %79 = vector.shape_cast %78 : vector<1x8x1xf32> to vector<8x1xf32>
    %80 = vector.shape_cast %63 : vector<8x1xf32> to vector<1x8x1xf32>
    tpu.vector_store %arg7[%c1_44, %c0_45, %c0_46], %80 {strides = array<i32>} : memref<2x8x1xf32, #tpu.memory_space<vmem>>, vector<1x8x1xf32>,
    %81 = vector.broadcast %58 : vector<8x1xi32> to vector<8x128xi32>
    %82 = arith.cmpi eq, %57, %81 : vector<8x128xi32>
    %83 = arith.extui %82 : vector<8x128xi1> to vector<8x128xi32>
    %84 = arith.sitofp %83 : vector<8x128xi32> to vector<8x128xf32>
    %c1_47 = arith.constant 1 : index
    %c0_48 = arith.constant 0 : index
    %c0_49 = arith.constant 0 : index
    %85 = vector.load %arg9[%c1_47, %c0_48, %c0_49] : memref<2x8x1xf32, #tpu.memory_space<vmem>>, vector<1x8x1xf32>
    %86 = vector.shape_cast %85 : vector<1x8x1xf32> to vector<8x1xf32>
    %87 = arith.mulf %84, %53 : vector<8x128xf32>
    %cst_50 = arith.constant dense<0.000000e+00> : vector<8xf32>
    %88 = vector.multi_reduction <add>, %87, %cst_50 [1] : vector<8x128xf32> to vector<8xf32>
    %89 = vector.shape_cast %88 : vector<8xf32> to vector<8x1xf32>
    %90 = arith.addf %86, %89 : vector<8x1xf32>
    %c1_51 = arith.constant 1 : index
    %c0_52 = arith.constant 0 : index
    %c0_53 = arith.constant 0 : index
    %91 = vector.load %arg9[%c1_51, %c0_52, %c0_53] : memref<2x8x1xf32, #tpu.memory_space<vmem>>, vector<1x8x1xf32>
    %92 = vector.shape_cast %91 : vector<1x8x1xf32> to vector<8x1xf32>
    %93 = vector.shape_cast %90 : vector<8x1xf32> to vector<1x8x1xf32>
    tpu.vector_store %arg9[%c1_51, %c0_52, %c0_53], %93 {strides = array<i32>} : memref<2x8x1xf32, #tpu.memory_space<vmem>>, vector<1x8x1xf32>,
    %c1_54 = arith.constant 1 : index
    %c0_55 = arith.constant 0 : index
    %c0_56 = arith.constant 0 : index
    %94 = vector.load %arg10[%c1_54, %c0_55, %c0_56] : memref<2x8x1xf32, #tpu.memory_space<vmem>>, vector<1x8x1xf32>
    %95 = vector.shape_cast %94 : vector<1x8x1xf32> to vector<8x1xf32>
    %cst_57 = arith.constant dense<0.000000e+00> : vector<8xf32>
    %96 = vector.multi_reduction <add>, %53, %cst_57 [1] : vector<8x128xf32> to vector<8xf32>
    %97 = vector.shape_cast %96 : vector<8xf32> to vector<8x1xf32>
    %98 = arith.addf %95, %97 : vector<8x1xf32>
    %c1_58 = arith.constant 1 : index
    %c0_59 = arith.constant 0 : index
    %c0_60 = arith.constant 0 : index
    %99 = vector.load %arg10[%c1_58, %c0_59, %c0_60] : memref<2x8x1xf32, #tpu.memory_space<vmem>>, vector<1x8x1xf32>
    %100 = vector.shape_cast %99 : vector<1x8x1xf32> to vector<8x1xf32>
    %101 = vector.shape_cast %98 : vector<8x1xf32> to vector<1x8x1xf32>
    tpu.vector_store %arg10[%c1_58, %c0_59, %c0_60], %101 {strides = array<i32>} : memref<2x8x1xf32, #tpu.memory_space<vmem>>, vector<1x8x1xf32>,
    %c0_i32_61 = arith.constant 0 : i32
    %102 = arith.cmpi eq, %arg1, %c0_i32_61 : i32
    %103 = arith.extui %102 : i1 to i32
    %c0_i32_62 = arith.constant 0 : i32
    %104 = arith.cmpi ne, %103, %c0_i32_62 : i32
    scf.if %104 {
      %c0_63 = arith.constant 0 : index
      %c0_64 = arith.constant 0 : index
      %c0_65 = arith.constant 0 : index
      %105 = vector.load %arg7[%c0_63, %c0_64, %c0_65] : memref<2x8x1xf32, #tpu.memory_space<vmem>>, vector<1x8x1xf32>
      %106 = vector.shape_cast %105 : vector<1x8x1xf32> to vector<8x1xf32>
      %c0_66 = arith.constant 0 : index
      %c0_67 = arith.constant 0 : index
      %c0_68 = arith.constant 0 : index
      %107 = vector.load %arg8[%c0_66, %c0_67, %c0_68] : memref<2x8x1xf32, #tpu.memory_space<vmem>>, vector<1x8x1xf32>
      %108 = vector.shape_cast %107 : vector<1x8x1xf32> to vector<8x1xf32>
      %109 = math.log %108 : vector<8x1xf32>
      %110 = arith.addf %106, %109 : vector<8x1xf32>
      %c0_69 = arith.constant 0 : index
      %c0_70 = arith.constant 0 : index
      %c0_71 = arith.constant 0 : index
      %111 = vector.load %arg9[%c0_69, %c0_70, %c0_71] : memref<2x8x1xf32, #tpu.memory_space<vmem>>, vector<1x8x1xf32>
      %112 = vector.shape_cast %111 : vector<1x8x1xf32> to vector<8x1xf32>
      %113 = arith.subf %110, %112 : vector<8x1xf32>
      %c0_72 = arith.constant 0 : index
      %c0_73 = arith.constant 0 : index
      %c0_74 = arith.constant 0 : index
      %114 = vector.load %arg10[%c0_72, %c0_73, %c0_74] : memref<2x8x1xf32, #tpu.memory_space<vmem>>, vector<1x8x1xf32>
      %115 = vector.shape_cast %114 : vector<1x8x1xf32> to vector<8x1xf32>
      %cst_75 = arith.constant 7.812500e-03 : f32
      %116 = vector.broadcast %cst_75 : f32 to vector<8x1xf32>
      %117 = arith.mulf %115, %116 : vector<8x1xf32>
      %118 = arith.subf %110, %117 : vector<8x1xf32>
      %cst_76 = arith.constant 2.000000e-01 : f32
      %119 = vector.broadcast %cst_76 : f32 to vector<8x1xf32>
      %120 = arith.mulf %119, %113 : vector<8x1xf32>
      %cst_77 = arith.constant 8.000000e-01 : f32
      %121 = vector.broadcast %cst_77 : f32 to vector<8x1xf32>
      %122 = arith.mulf %121, %118 : vector<8x1xf32>
      %123 = arith.addf %120, %122 : vector<8x1xf32>
      %cst_78 = arith.constant 0.000000e+00 : f32
      %124 = vector.broadcast %cst_78 : f32 to vector<8x1xf32>
      %125 = arith.subf %124, %113 : vector<8x1xf32>
      %126 = math.exp %125 : vector<8x1xf32>
      %127 = tpu.iota {dimensions = array<i32: 1>} : vector<8x128xi32>
      %c0_i32_79 = arith.constant 0 : i32
      %128 = vector.broadcast %c0_i32_79 : i32 to vector<8x128xi32>
      %129 = arith.cmpi eq, %127, %128 : vector<8x128xi32>
      %cst_80 = arith.constant 0.000000e+00 : f32
      %130 = vector.shape_cast %123 : vector<8x1xf32> to vector<8x1xf32>
      %131 = vector.broadcast %130 : vector<8x1xf32> to vector<8x128xf32>
      %132 = vector.broadcast %cst_80 : f32 to vector<8x128xf32>
      %133 = arith.select %129, %131, %132 : vector<8x128xi1>, vector<8x128xf32>
      %c1_i32 = arith.constant 1 : i32
      %134 = vector.broadcast %c1_i32 : i32 to vector<8x128xi32>
      %135 = arith.cmpi eq, %127, %134 : vector<8x128xi32>
      %cst_81 = arith.constant 0.000000e+00 : f32
      %136 = vector.shape_cast %113 : vector<8x1xf32> to vector<8x1xf32>
      %137 = vector.broadcast %136 : vector<8x1xf32> to vector<8x128xf32>
      %138 = vector.broadcast %cst_81 : f32 to vector<8x128xf32>
      %139 = arith.select %135, %137, %138 : vector<8x128xi1>, vector<8x128xf32>
      %140 = arith.addf %133, %139 : vector<8x128xf32>
      %c2_i32 = arith.constant 2 : i32
      %141 = vector.broadcast %c2_i32 : i32 to vector<8x128xi32>
      %142 = arith.cmpi eq, %127, %141 : vector<8x128xi32>
      %cst_82 = arith.constant 0.000000e+00 : f32
      %143 = vector.shape_cast %126 : vector<8x1xf32> to vector<8x1xf32>
      %144 = vector.broadcast %143 : vector<8x1xf32> to vector<8x128xf32>
      %145 = vector.broadcast %cst_82 : f32 to vector<8x128xf32>
      %146 = arith.select %142, %144, %145 : vector<8x128xi1>, vector<8x128xf32>
      %147 = arith.addf %140, %146 : vector<8x128xf32>
      %c0_83 = arith.constant 0 : index
      %c0_84 = arith.constant 0 : index
      %148 = vector.load %arg5[%c0_83, %c0_84] : memref<8x128xf32, #tpu.memory_space<vmem>>, vector<8x128xf32>
      tpu.vector_store %arg5[%c0_83, %c0_84], %147 {strides = array<i32>} : memref<8x128xf32, #tpu.memory_space<vmem>>, vector<8x128xf32>,
      %c1_85 = arith.constant 1 : index
      %c0_86 = arith.constant 0 : index
      %c0_87 = arith.constant 0 : index
      %149 = vector.load %arg7[%c1_85, %c0_86, %c0_87] : memref<2x8x1xf32, #tpu.memory_space<vmem>>, vector<1x8x1xf32>
      %150 = vector.shape_cast %149 : vector<1x8x1xf32> to vector<8x1xf32>
      %c1_88 = arith.constant 1 : index
      %c0_89 = arith.constant 0 : index
      %c0_90 = arith.constant 0 : index
      %151 = vector.load %arg8[%c1_88, %c0_89, %c0_90] : memref<2x8x1xf32, #tpu.memory_space<vmem>>, vector<1x8x1xf32>
      %152 = vector.shape_cast %151 : vector<1x8x1xf32> to vector<8x1xf32>
      %153 = math.log %152 : vector<8x1xf32>
      %154 = arith.addf %150, %153 : vector<8x1xf32>
      %c1_91 = arith.constant 1 : index
      %c0_92 = arith.constant 0 : index
      %c0_93 = arith.constant 0 : index
      %155 = vector.load %arg9[%c1_91, %c0_92, %c0_93] : memref<2x8x1xf32, #tpu.memory_space<vmem>>, vector<1x8x1xf32>
      %156 = vector.shape_cast %155 : vector<1x8x1xf32> to vector<8x1xf32>
      %157 = arith.subf %154, %156 : vector<8x1xf32>
      %c1_94 = arith.constant 1 : index
      %c0_95 = arith.constant 0 : index
      %c0_96 = arith.constant 0 : index
      %158 = vector.load %arg10[%c1_94, %c0_95, %c0_96] : memref<2x8x1xf32, #tpu.memory_space<vmem>>, vector<1x8x1xf32>
      %159 = vector.shape_cast %158 : vector<1x8x1xf32> to vector<8x1xf32>
      %cst_97 = arith.constant 7.812500e-03 : f32
      %160 = vector.broadcast %cst_97 : f32 to vector<8x1xf32>
      %161 = arith.mulf %159, %160 : vector<8x1xf32>
      %162 = arith.subf %154, %161 : vector<8x1xf32>
      %cst_98 = arith.constant 2.000000e-01 : f32
      %163 = vector.broadcast %cst_98 : f32 to vector<8x1xf32>
      %164 = arith.mulf %163, %157 : vector<8x1xf32>
      %cst_99 = arith.constant 8.000000e-01 : f32
      %165 = vector.broadcast %cst_99 : f32 to vector<8x1xf32>
      %166 = arith.mulf %165, %162 : vector<8x1xf32>
      %167 = arith.addf %164, %166 : vector<8x1xf32>
      %cst_100 = arith.constant 0.000000e+00 : f32
      %168 = vector.broadcast %cst_100 : f32 to vector<8x1xf32>
      %169 = arith.subf %168, %157 : vector<8x1xf32>
      %170 = math.exp %169 : vector<8x1xf32>
      %171 = tpu.iota {dimensions = array<i32: 1>} : vector<8x128xi32>
      %c0_i32_101 = arith.constant 0 : i32
      %172 = vector.broadcast %c0_i32_101 : i32 to vector<8x128xi32>
      %173 = arith.cmpi eq, %171, %172 : vector<8x128xi32>
      %cst_102 = arith.constant 0.000000e+00 : f32
      %174 = vector.shape_cast %167 : vector<8x1xf32> to vector<8x1xf32>
      %175 = vector.broadcast %174 : vector<8x1xf32> to vector<8x128xf32>
      %176 = vector.broadcast %cst_102 : f32 to vector<8x128xf32>
      %177 = arith.select %173, %175, %176 : vector<8x128xi1>, vector<8x128xf32>
      %c1_i32_103 = arith.constant 1 : i32
      %178 = vector.broadcast %c1_i32_103 : i32 to vector<8x128xi32>
      %179 = arith.cmpi eq, %171, %178 : vector<8x128xi32>
      %cst_104 = arith.constant 0.000000e+00 : f32
      %180 = vector.shape_cast %157 : vector<8x1xf32> to vector<8x1xf32>
      %181 = vector.broadcast %180 : vector<8x1xf32> to vector<8x128xf32>
      %182 = vector.broadcast %cst_104 : f32 to vector<8x128xf32>
      %183 = arith.select %179, %181, %182 : vector<8x128xi1>, vector<8x128xf32>
      %184 = arith.addf %177, %183 : vector<8x128xf32>
      %c2_i32_105 = arith.constant 2 : i32
      %185 = vector.broadcast %c2_i32_105 : i32 to vector<8x128xi32>
      %186 = arith.cmpi eq, %171, %185 : vector<8x128xi32>
      %cst_106 = arith.constant 0.000000e+00 : f32
      %187 = vector.shape_cast %170 : vector<8x1xf32> to vector<8x1xf32>
      %188 = vector.broadcast %187 : vector<8x1xf32> to vector<8x128xf32>
      %189 = vector.broadcast %cst_106 : f32 to vector<8x128xf32>
      %190 = arith.select %186, %188, %189 : vector<8x128xi1>, vector<8x128xf32>
      %191 = arith.addf %184, %190 : vector<8x128xf32>
      %c0_107 = arith.constant 0 : index
      %c0_108 = arith.constant 0 : index
      %192 = vector.load %arg6[%c0_107, %c0_108] : memref<8x128xf32, #tpu.memory_space<vmem>>, vector<8x128xf32>
      tpu.vector_store %arg6[%c0_107, %c0_108], %191 {strides = array<i32>} : memref<8x128xf32, #tpu.memory_space<vmem>>, vector<8x128xf32>,
    } else {
    }
    return
  }
  func.func @transform_0(%arg0: i32, %arg1: i32) -> (i32, i32) {
    %c0_i32 = arith.constant 0 : i32
    return %arg0, %arg1 : i32, i32
  }
  func.func @transform_1(%arg0: i32, %arg1: i32) -> (i32, i32) {
    %c0_i32 = arith.constant 0 : i32
    return %arg0, %arg1 : i32, i32
  }
  func.func @transform_2(%arg0: i32, %arg1: i32) -> (i32, i32) {
    %c0_i32 = arith.constant 0 : i32
    %c0_i32_0 = arith.constant 0 : i32
    return %arg0, %c0_i32 : i32, i32
  }
  func.func @transform_3(%arg0: i32, %arg1: i32) -> (i32, i32) {
    %c0_i32 = arith.constant 0 : i32
    %c0_i32_0 = arith.constant 0 : i32
    return %arg0, %c0_i32 : i32, i32
  }
  func.func @transform_4(%arg0: i32, %arg1: i32) -> (i32, i32) {
    %c0_i32 = arith.constant 0 : i32
    %c0_i32_0 = arith.constant 0 : i32
    return %arg0, %c0_i32 : i32, i32
  }
}

</mosaic_0001>

<llo_original>
// kernel: nformer_link_prediction.1
$region0: #{nformer_link_prediction.1}
  #allocation0 [shape = 'u32[]', space=smem, size = 0x4, offset = 0x4, fixed_abs, tag = 'smem constant byte address 0x4 - core index']
  #allocation1 [shape = 'u32[72,128]{1,0:T(1,128)}', space=vmem, size = 0x9000, scoped, tag = 'internal scratch']
  #allocation2 [shape = 'f32[2,8,1]{2,1,0:T(8,128)}', space=vmem, size = 0x2000, scoped, tag = 'scratch operand']
  #allocation3 [shape = 'f32[2,8,1]{2,1,0:T(8,128)}', space=vmem, size = 0x2000, scoped, tag = 'scratch operand']
  #allocation4 [shape = 'f32[2,8,1]{2,1,0:T(8,128)}', space=vmem, size = 0x2000, scoped, tag = 'scratch operand']
  #allocation5 [shape = 'f32[2,8,1]{2,1,0:T(8,128)}', space=vmem, size = 0x2000, scoped, tag = 'scratch operand']
  %s0 = inlined_call_operand.hbm [shape: f32[8,128], index: 0, kind: input, shape index: {}]
  %s1 = inlined_call_operand.hbm [shape: f32[8,128], index: 1, kind: input, shape index: {}]
  %s2 = inlined_call_operand.vmem [shape: s32[8,2], index: 2, kind: input, shape index: {}]
  %s3 = inlined_call_operand.vmem [shape: f32[8,128], index: 3, kind: output, shape index: {0}]
  %s4 = inlined_call_operand.vmem [shape: f32[8,128], index: 4, kind: output, shape index: {1}]
  %5 = xla_tuple %s3, %s4
  %s6 = sld [smem:[#allocation0]]
  $region46: #{nformer_link_prediction.1} parent=0
    _
  %s8 = ssub.s32 1, %s6
  %s9 = scalar_select 0, %s8, %s6
  $region1: #{nformer_link_prediction.1} parent=0
    #allocation6 [shape = 'u8[4096]{0}', space=vmem, size = 0x1000, scoped, tag = 'input window, operand 0, single buffered']
    #allocation7 [shape = 's32[1]{0}', space=sflag, size = 0x4, scoped, tag = 'scoped memory for nformer_link_prediction.1']
    #allocation8 [shape = 'u8[4096]{0}', space=vmem, size = 0x1000, scoped, tag = 'input window, operand 1, single buffered']
    #allocation9 [shape = 's32[1]{0}', space=sflag, size = 0x4, scoped, tag = 'scoped memory for nformer_link_prediction.1']
    %10 = vsyncpa [#allocation7], 0
    %11 = vsyncpa [#allocation9], 0
    // Predicated region
    $region2: #{nformer_link_prediction.1} parent=1 // pred_check
      _
    $region3: #{nformer_link_prediction.1} parent=1 // pred_check_branch
      %13 = sbr.rel (0) target = $region5
    $region4: #{nformer_link_prediction.1} parent=1 // pred_region
      %15 = vsyncadd [#allocation7], 0
      %s17 = sshll.u32 %s0, 4
      %s18 = int_to_ptr.hbm [resolvable:$true] %s17
      %s19 = sshll.u32 [#allocation6], 4
      %s20 = int_to_ptr.vmem [resolvable:$true] %s19
      %22 = dma.hbm_to_vmem [thread:$0]  %s18, 128, %s20, [#allocation7]
    $region5: #{nformer_link_prediction.1} parent=1 // pred_fallthru
      _
    // Predicated region
    $region6: #{nformer_link_prediction.1} parent=1 // pred_check
      _
    $region7: #{nformer_link_prediction.1} parent=1 // pred_check_branch
      %24 = sbr.rel (0) target = $region9
    $region8: #{nformer_link_prediction.1} parent=1 // pred_region
      %26 = vsyncadd [#allocation9], 0
      %s28 = sshll.u32 %s1, 4
      %s29 = int_to_ptr.hbm [resolvable:$true] %s28
      %s30 = sshll.u32 [#allocation8], 4
      %s31 = int_to_ptr.vmem [resolvable:$true] %s30
      %33 = dma.hbm_to_vmem [thread:$0]  %s29, 128, %s31, [#allocation9]
    $region9: #{nformer_link_prediction.1} parent=1 // pred_fallthru
      _
    // Predicated region
    $region10: #{nformer_link_prediction.1} parent=1 // pred_check
      _
    $region11: #{nformer_link_prediction.1} parent=1 // pred_check_branch
      %35 = sbr.rel (0) target = $region13
    $region12: #{nformer_link_prediction.1} parent=1 // pred_region
      _
    $region13: #{nformer_link_prediction.1} parent=1 // pred_fallthru
      _
    // Predicated region
    $region14: #{nformer_link_prediction.1} parent=1 // pred_check
      _
    $region15: #{nformer_link_prediction.1} parent=1 // pred_check_branch
      %37 = sbr.rel (0) target = $region17
    $region16: #{nformer_link_prediction.1} parent=1 // pred_region
      %39 = dma.done [#allocation7], 128
    $region17: #{nformer_link_prediction.1} parent=1 // pred_fallthru
      _
    // Predicated region
    $region18: #{nformer_link_prediction.1} parent=1 // pred_check
      _
    $region19: #{nformer_link_prediction.1} parent=1 // pred_check_branch
      %41 = sbr.rel (0) target = $region21
    $region20: #{nformer_link_prediction.1} parent=1 // pred_region
      %43 = dma.done [#allocation9], 128
    $region21: #{nformer_link_prediction.1} parent=1 // pred_fallthru
      _
    %p44 = scmp.eq.s32.totalorder 0, 0
    // Predicated region
    $region22: #{nformer_link_prediction.1} parent=1 // pred_check
      %p45 = pneg %p44
    $region23: #{nformer_link_prediction.1} parent=1 // pred_check_branch
      %47 = sbr.rel (%p45) target = $region25
    $region24: #{nformer_link_prediction.1} parent=1 // pred_region
      %vm48 = vcmask 7168
      %49 = vst.msk [vmem:[#allocation2] sm:$0xff] %vm48, -1e+30
      %50 = vst.msk [vmem:[#allocation2 + $0x8] sm:$0xff] %vm48, -1e+30
      %51 = vst.msk [vmem:[#allocation3] sm:$0xff] %vm48, 0.0
      %52 = vst.msk [vmem:[#allocation3 + $0x8] sm:$0xff] %vm48, 0.0
      %53 = vst.msk [vmem:[#allocation4] sm:$0xff] %vm48, 0.0
      %54 = vst.msk [vmem:[#allocation4 + $0x8] sm:$0xff] %vm48, 0.0
      %55 = vst.msk [vmem:[#allocation5] sm:$0xff] %vm48, 0.0
      %56 = vst.msk [vmem:[#allocation5 + $0x8] sm:$0xff] %vm48, 0.0
    $region25: #{nformer_link_prediction.1} parent=1 // pred_fallthru
      _
    %v57 = vld [vmem:[%s2] sm:$0xff]
    %v58 = vld [vmem:[#allocation6] sm:$0xff]
    %s59 = smul.u32 0, 128
    %v60 = vlaneseq
    %v61 = vand.u32 %v60, 127
    %v62 = vstv %s59
    %v63 = vadd.s32 %v62, %v61
    %v64 = vld [vmem:[#allocation2] sm:$0xff]
    %65 = vmax.xlane.f32.xlu0 %v58
    %v66 = vpop.xlane.xlu0 %65
    %v67 = vmax.f32 %v64, %v66
    %v68 = vsub.f32 %v64, %v67
    %v69 = vmul.f32 %v68, 1.442695
    %v70 = vpow.pop %v69
    %72 = vset.pattern.permute.xlu0 0
    %73 = vperm.xlu0 %72, %v67
    %v74 = vpop.permute.xlu0 %73
    %v76 = vsub.f32 %v58, %v74
    %v77 = vmul.f32 %v76, 1.442695
    %v78 = vpow.pop %v77
    %v79 = vld [vmem:[#allocation3] sm:$0xff]
    %v80 = vmul.f32 %v70, %v79
    %81 = vadd.xlane.f32.xlu0 %v78
    %v82 = vpop.xlane.xlu0 %81
    %v83 = vadd.f32 %v80, %v82
    %vm84 = vcmask 7168
    %85 = vst.msk [vmem:[#allocation3] sm:$0xff] %vm84, %v83
    %86 = vst.msk [vmem:[#allocation2] sm:$0xff] %vm84, %v67
    %87 = vset.pattern.permute.xlu0 0
    %88 = vperm.xlu0 %87, %v57
    %v89 = vpop.permute.xlu0 %88
    %vm90 = vcmp.eq.s32.totalorder %v63, %v89
    %v91 = vsel %vm90, 1, 0
    %v92 = vcvt.s32.f32 %v91
    %v93 = vld [vmem:[#allocation4] sm:$0xff]
    %v94 = vmul.f32 %v92, %v58
    %95 = vadd.xlane.f32.xlu0 %v94
    %v96 = vpop.xlane.xlu0 %95
    %v97 = vadd.f32 %v93, %v96
    %98 = vst.msk [vmem:[#allocation4] sm:$0xff] %vm84, %v97
    %v99 = vld [vmem:[#allocation5] sm:$0xff]
    %100 = vadd.xlane.f32.xlu0 %v58
    %v101 = vpop.xlane.xlu0 %100
    %v102 = vadd.f32 %v99, %v101
    %103 = vst.msk [vmem:[#allocation5] sm:$0xff] %vm84, %v102
    %v104 = vld [vmem:[#allocation8] sm:$0xff]
    %s105 = scalar_lea.vmem [#allocation2], 8
    %v106 = vld [vmem:[%s105] sm:$0xff]
    %107 = vmax.xlane.f32.xlu0 %v104
    %v108 = vpop.xlane.xlu0 %107
    %v109 = vmax.f32 %v106, %v108
    %v110 = vsub.f32 %v106, %v109
    %v111 = vmul.f32 %v110, 1.442695
    %v112 = vpow.pop %v111
    %114 = vset.pattern.permute.xlu0 0
    %115 = vperm.xlu0 %114, %v109
    %v116 = vpop.permute.xlu0 %115
    %v118 = vsub.f32 %v104, %v116
    %v119 = vmul.f32 %v118, 1.442695
    %v120 = vpow.pop %v119
    %s121 = scalar_lea.vmem [#allocation3], 8
    %v122 = vld [vmem:[%s121] sm:$0xff]
    %v123 = vmul.f32 %v112, %v122
    %124 = vadd.xlane.f32.xlu0 %v120
    %v125 = vpop.xlane.xlu0 %124
    %v126 = vadd.f32 %v123, %v125
    %127 = vst.msk [vmem:[%s121] sm:$0xff] %vm84, %v126
    %128 = vst.msk [vmem:[%s105] sm:$0xff] %vm84, %v109
    %129 = vset.pattern.permute.xlu0 1
    %130 = vperm.xlu0 %129, %v57
    %v131 = vpop.permute.xlu0 %130
    %vm132 = vcmp.eq.s32.totalorder %v63, %v131
    %v133 = vsel %vm132, 1, 0
    %v134 = vcvt.s32.f32 %v133
    %s135 = scalar_lea.vmem [#allocation4], 8
    %v136 = vld [vmem:[%s135] sm:$0xff]
    %v137 = vmul.f32 %v134, %v104
    %138 = vadd.xlane.f32.xlu0 %v137
    %v139 = vpop.xlane.xlu0 %138
    %v140 = vadd.f32 %v136, %v139
    %141 = vst.msk [vmem:[%s135] sm:$0xff] %vm84, %v140
    %s142 = scalar_lea.vmem [#allocation5], 8
    %v143 = vld [vmem:[%s142] sm:$0xff]
    %144 = vadd.xlane.f32.xlu0 %v104
    %v145 = vpop.xlane.xlu0 %144
    %v146 = vadd.f32 %v143, %v145
    %147 = vst.msk [vmem:[%s142] sm:$0xff] %vm84, %v146
    // Predicated region
    $region26: #{nformer_link_prediction.1} parent=1 // pred_check
      %p148 = pneg %p44
    $region27: #{nformer_link_prediction.1} parent=1 // pred_check_branch
      %150 = sbr.rel (%p148) target = $region29
    $region28: #{nformer_link_prediction.1} parent=1 // pred_region
      %v151 = vld [vmem:[#allocation2] sm:$0xff]
      %v152 = vld [vmem:[#allocation3] sm:$0xff]
      %v153 = vlog2.pop %v152
      %v154 = vmul.f32 %v153, 0.6931472
      %v155 = vadd.f32 %v151, %v154
      %v156 = vld [vmem:[#allocation4] sm:$0xff]
      %v157 = vsub.f32 %v155, %v156
      %v158 = vld [vmem:[#allocation5] sm:$0xff]
      %v159 = vmul.f32 %v158, 0.0078125
      %v160 = vsub.f32 %v155, %v159
      %v161 = vmul.f32 %v157, 0.2
      %v162 = vmul.f32 %v160, 0.8
      %v163 = vadd.f32 %v161, %v162
      %v164 = vsub.f32 0.0, %v157
      %v165 = vmul.f32 %v164, 1.442695
      %v166 = vpow.pop %v165
      %vm167 = vcmp.eq.s32.totalorder %v61, 0
      %169 = vset.pattern.permute.xlu0 0
      %170 = vperm.xlu0 %169, %v163
      %v171 = vpop.permute.xlu0 %170
      %v173 = vsel %vm167, %v171, 0.0
      %vm174 = vcmp.eq.s32.totalorder %v61, 1
      %176 = vset.pattern.permute.xlu0 0
      %177 = vperm.xlu0 %176, %v157
      %v178 = vpop.permute.xlu0 %177
      %v180 = vsel %vm174, %v178, 0.0
      %v181 = vadd.f32 %v173, %v180
      %vm182 = vcmp.eq.s32.totalorder %v61, 2
      %184 = vset.pattern.permute.xlu0 0
      %185 = vperm.xlu0 %184, %v166
      %v186 = vpop.permute.xlu0 %185
      %v188 = vsel %vm182, %v186, 0.0
      %v189 = vadd.f32 %v181, %v188
      %190 = vst [vmem:[%s3] sm:$0xff] %v189
      %v191 = vld [vmem:[%s105] sm:$0xff]
      %v192 = vld [vmem:[%s121] sm:$0xff]
      %v193 = vlog2.pop %v192
      %v194 = vmul.f32 %v193, 0.6931472
      %v195 = vadd.f32 %v191, %v194
      %v196 = vld [vmem:[%s135] sm:$0xff]
      %v197 = vsub.f32 %v195, %v196
      %v198 = vld [vmem:[%s142] sm:$0xff]
      %v199 = vmul.f32 %v198, 0.0078125
      %v200 = vsub.f32 %v195, %v199
      %v201 = vmul.f32 %v197, 0.2
      %v202 = vmul.f32 %v200, 0.8
      %v203 = vadd.f32 %v201, %v202
      %v204 = vsub.f32 0.0, %v197
      %v205 = vmul.f32 %v204, 1.442695
      %v206 = vpow.pop %v205
      %208 = vset.pattern.permute.xlu0 0
      %209 = vperm.xlu0 %208, %v203
      %v210 = vpop.permute.xlu0 %209
      %v212 = vsel %vm167, %v210, 0.0
      %214 = vset.pattern.permute.xlu0 0
      %215 = vperm.xlu0 %214, %v197
      %v216 = vpop.permute.xlu0 %215
      %v218 = vsel %vm174, %v216, 0.0
      %v219 = vadd.f32 %v212, %v218
      %221 = vset.pattern.permute.xlu0 0
      %222 = vperm.xlu0 %221, %v206
      %v223 = vpop.permute.xlu0 %222
      %v225 = vsel %vm182, %v223, 0.0
      %v226 = vadd.f32 %v219, %v225
      %227 = vst [vmem:[%s4] sm:$0xff] %v226
    $region29: #{nformer_link_prediction.1} parent=1 // pred_fallthru
      _
    // Predicated region
    $region30: #{nformer_link_prediction.1} parent=1 // pred_check
      _
    $region31: #{nformer_link_prediction.1} parent=1 // pred_check_branch
      %229 = sbr.rel (0) target = $region33
    $region32: #{nformer_link_prediction.1} parent=1 // pred_region
      _
    $region33: #{nformer_link_prediction.1} parent=1 // pred_fallthru
      _
    // Predicated region
    $region34: #{nformer_link_prediction.1} parent=1 // pred_check
      _
    $region35: #{nformer_link_prediction.1} parent=1 // pred_check_branch
      %231 = sbr.rel (0) target = $region37
    $region36: #{nformer_link_prediction.1} parent=1 // pred_region
      _
    $region37: #{nformer_link_prediction.1} parent=1 // pred_fallthru
      _
    // Predicated region
    $region38: #{nformer_link_prediction.1} parent=1 // pred_check
      _
    $region39: #{nformer_link_prediction.1} parent=1 // pred_check_branch
      %233 = sbr.rel (0) target = $region41
    $region40: #{nformer_link_prediction.1} parent=1 // pred_region
      _
    $region41: #{nformer_link_prediction.1} parent=1 // pred_fallthru
      _
    // Predicated region
    $region42: #{nformer_link_prediction.1} parent=1 // pred_check
      _
    $region43: #{nformer_link_prediction.1} parent=1 // pred_check_branch
      %235 = sbr.rel (0) target = $region45
    $region44: #{nformer_link_prediction.1} parent=1 // pred_region
      _
    $region45: #{nformer_link_prediction.1} parent=1 // pred_fallthru
      _
    %236 = vsyncpa [#allocation7], 1
    %237 = vsyncpa [#allocation9], 1

</llo_original>
